<compile_context>
chip_gen: v5e
topology: v5e:2x2
jax: 0.10.0
libtpu: 0.0.40
codegen_flags: <defaults>
</compile_context>

<pallas_src>
import functools

import jax
import jax.numpy as jnp
from jax.experimental import pallas as pl
from jax.experimental.pallas import tpu as pltpu


# ----------------------------------------------------------------------------
# Pallas kernel: fused deconv0 -> prelu0 -> conv0 -> prelu1 -> residual ->
#                deconv1 -> prelu2 -> add, as 3 lane-dense matmuls.
# ----------------------------------------------------------------------------
def _upproj_kernel(alpha_ref,            # SMEM (3,)   scalar PReLU slopes
                   x_ref,                # (1, C, TM)  f32 input tile (X^T layout)
                   wd0_ref, bd0_ref,     # (4C, C) bf16, (4C, 1) f32   deconv0
                   wc_ref,  bc_ref,      # (C, 4C) bf16, (C, 1)  f32   conv0
                   wd1_ref, bd1_ref,     # (4C, C) bf16, (4C, 1) f32   deconv1
                   out_ref,              # (1, 4C, TM) f32 output tile
                   *, op_dtype):
    a0 = alpha_ref[0]
    a1 = alpha_ref[1]
    a2 = alpha_ref[2]

    def prelu(v, a):
        return jnp.where(v > 0, v, a * v)

    x32 = x_ref[0].astype(jnp.float32)                       # (C, TM)

    # H0 = prelu0(deconv0(x)) : single (4C, C) x (C, TM) matmul.
    h0 = jnp.dot(wd0_ref[...], x32.astype(op_dtype),
                 preferred_element_type=jnp.float32) + bd0_ref[...]
    h0 = prelu(h0, a0)                                        # (4C, TM) f32

    # L0 = prelu1(conv0(H0)) : single (C, 4C) x (4C, TM) matmul (K = 4C).
    l0 = jnp.dot(wc_ref[...], h0.astype(op_dtype),
                 preferred_element_type=jnp.float32) + bc_ref[...]
    l0 = prelu(l0, a1)                                        # (C, TM) f32

    r = l0 - x32                                              # residual = L0 - L_prev

    # H1 = prelu2(deconv1(residual)) : single (4C, C) x (C, TM) matmul.
    z = jnp.dot(wd1_ref[...], r.astype(op_dtype),
                preferred_element_type=jnp.float32) + bd1_ref[...]

    out_ref[0] = (h0 + prelu(z, a2)).astype(out_ref.dtype)    # H0 + H1


def _choose_tile(hw, c, n):
    """Pick the lane tile TM over the flattened H*W axis and its padded extent."""
    # VMEM budget per block (input (C,TM) + output (4C,TM), f32, x2 buffers
    # stays well under the v7x 64 MiB / 32 MiB-scoped limit): ~2 MiB of slabs.
    bytes_per_col = 5 * c * 4
    cap = (2 * 1024 * 1024) // bytes_per_col
    cap = max(128, min(4096, (cap // 128) * 128))
    # If batch==1, make sure the grid still has >=2 blocks (feed both v7x TCs).
    if n == 1 and hw >= 256:
        cap = min(cap, max(128, ((hw // 2) // 128) * 128))
    if hw <= cap:
        return hw, hw                               # one full-extent block / image
    for t in (4096, 2048, 1024, 512, 256, 128):
        if t <= cap and hw % t == 0:
            return t, hw                            # lane-dense, no padding
    hwp = ((hw + cap - 1) // cap) * cap             # pad instead of one huge block
    return cap, hwp


@jax.jit
def up_projection_unit(x_nchw, wd0, bd0, wc, bc, wd1, bd1, alphas):
    """x_nchw: (N, C, H, W) float32.  Weights in PyTorch layouts:
       wd0/wd1: (Cin, Cout, 2, 2) ConvTranspose2d; wc: (Cout, Cin, 2, 2) Conv2d;
       biases: (C,); alphas: (3,) scalar PReLU slopes."""
    N, C, H, W = x_nchw.shape
    HW = H * W
    TM, HWp = _choose_tile(HW, C, N)

    # Free reshape; NO NHWC transpose of the input.
    x3 = x_nchw.reshape(N, C, HW)
    if HWp != HW:
        x3 = jnp.pad(x3, ((0, 0), (0, 0), (0, HWp - HW)))

    op_dtype = jnp.bfloat16   # MXU operand dtype (accumulation stays f32)

    # Concatenated per-offset weights, k = di*2 + dj.
    #  deconv: out[co, k] += x[ci] * Wd[ci, co, di, dj]  -> Wd^T rows = (k, co)
    wd0_t = jnp.transpose(wd0, (2, 3, 1, 0)).reshape(4 * C, C).astype(op_dtype)
    wd1_t = jnp.transpose(wd1, (2, 3, 1, 0)).reshape(4 * C, C).astype(op_dtype)
    #  conv:   out[co] += h[ci, k] * Wc[co, ci, di, dj]  -> Wc^T cols = (k, ci)
    wc_t = jnp.transpose(wc, (0, 2, 3, 1)).reshape(C, 4 * C).astype(op_dtype)

    bd0_c = jnp.tile(bd0.astype(jnp.float32), 4).reshape(4 * C, 1)
    bd1_c = jnp.tile(bd1.astype(jnp.float32), 4).reshape(4 * C, 1)
    bc_c = bc.astype(jnp.float32).reshape(C, 1)
    alphas = alphas.astype(jnp.float32)

    full2 = lambda n, m: (0, 0)

    out3 = pl.pallas_call(
        functools.partial(_upproj_kernel, op_dtype=op_dtype),
        out_shape=jax.ShapeDtypeStruct((N, 4 * C, HWp), jnp.float32),
        grid=(N, HWp // TM),
        in_specs=[
            pl.BlockSpec(memory_space=pltpu.SMEM),                 # alphas
            pl.BlockSpec((1, C, TM), lambda n, m: (n, 0, m)),      # x tile
            pl.BlockSpec((4 * C, C), full2),                       # wd0
            pl.BlockSpec((4 * C, 1), full2),                       # bd0
            pl.BlockSpec((C, 4 * C), full2),                       # wc
            pl.BlockSpec((C, 1), full2),                           # bc
            pl.BlockSpec((4 * C, C), full2),                       # wd1
            pl.BlockSpec((4 * C, 1), full2),                       # bd1
        ],
        out_specs=pl.BlockSpec((1, 4 * C, TM), lambda n, m: (n, 0, m)),
        compiler_params=pltpu.CompilerParams(
            dimension_semantics=("parallel", "parallel")),
    )(alphas, x3, wd0_t, bd0_c, wc_t, bc_c, wd1_t, bd1_c)

    # Sub-pixel reassembly to NCHW (N, C, 2H, 2W).  Rows of out3 are (di,dj,c).
    if HWp != HW:
        out3 = out3[..., :HW]
    out = out3.reshape(N, 2, 2, C, H, W)                 # (n, di, dj, c, h, w)
    out = jnp.transpose(out, (0, 3, 4, 1, 5, 2)).reshape(N, C, 2 * H, 2 * W)
    return out


# ----------------------------------------------------------------------------
# Pure-JAX reference (straight transcription of the PyTorch forward, f32).
# ----------------------------------------------------------------------------
def _ref_forward(x, wd0, bd0, wc, bc, wd1, bd1, alphas):
    a0, a1, a2 = alphas[0], alphas[1], alphas[2]

    def prelu(v, a):
        return jnp.where(v > 0, v, a * v)

    def deconv(x, w, b):  # ConvTranspose2d, k=2, stride=2, pad=0; w: (Cin,Cout,2,2)
        N, Ci, H, W = x.shape
        Co = w.shape[1]
        y = jnp.einsum('nchw,cokl->nohwkl', x, w)
        y = jnp.transpose(y, (0, 1, 2, 4, 3, 5)).reshape(N, Co, 2 * H, 2 * W)
        return y + b.reshape(1, -1, 1, 1)

    def conv(x, w, b):    # Conv2d, k=2, stride=2, pad=0; w: (Cout,Cin,2,2)
        y = jax.lax.conv_general_dilated(
            x, w, window_strides=(2, 2), padding='VALID',
            dimension_numbers=('NCHW', 'OIHW', 'NCHW'))
        return y + b.reshape(1, -1, 1, 1)

    H0 = prelu(deconv(x, wd0, bd0), a0)
    L0 = prelu(conv(H0, wc, bc), a1)
    H1 = prelu(deconv(L0 - x, wd1, bd1), a2)
    return H0 + H1


if __name__ == "__main__":
    key = jax.random.PRNGKey(0)
    N, C, H, W = 2, 8, 16, 16   # n_r = 8

    ks = jax.random.split(key, 8)
    x = jax.random.normal(ks[0], (N, C, H, W), jnp.float32)
    scale = 1.0 / (C * 4) ** 0.5
    wd0 = jax.random.normal(ks[1], (C, C, 2, 2), jnp.float32) * scale
    bd0 = jax.random.normal(ks[2], (C,), jnp.float32) * 0.1
    wc = jax.random.normal(ks[3], (C, C, 2, 2), jnp.float32) * scale
    bc = jax.random.normal(ks[4], (C,), jnp.float32) * 0.1
    wd1 = jax.random.normal(ks[5], (C, C, 2, 2), jnp.float32) * scale
    bd1 = jax.random.normal(ks[6], (C,), jnp.float32) * 0.1
    alphas = jnp.array([0.25, 0.2, 0.1], jnp.float32)  # prelu0/1/2 slopes

    out = up_projection_unit(x, wd0, bd0, wc, bc, wd1, bd1, alphas)
    out = jax.block_until_ready(out)

    ref = _ref_forward(x, wd0, bd0, wc, bc, wd1, bd1, alphas)
    assert out.shape == (N, C, 2 * H, 2 * W), out.shape
    # bf16 matmul operands (f32 accumulate) vs. f32 reference -> loosen slightly.
    assert jnp.allclose(out, ref, rtol=2e-2, atol=2e-2), \
        float(jnp.max(jnp.abs(out - ref)))

    print("KERNEL_OK")
</pallas_src>

<mosaic_0001>
module attributes {stable_mosaic.version = 11 : i64} {
  func.func @_upproj_kernel(%arg0: i32, %arg1: i32, %arg2: memref<3xf32, #tpu.memory_space<smem>>, %arg3: memref<1x8x256xf32, #tpu.memory_space<vmem>>, %arg4: memref<32x8xbf16, #tpu.memory_space<vmem>>, %arg5: memref<32x1xf32, #tpu.memory_space<vmem>>, %arg6: memref<8x32xbf16, #tpu.memory_space<vmem>>, %arg7: memref<8x1xf32, #tpu.memory_space<vmem>>, %arg8: memref<32x8xbf16, #tpu.memory_space<vmem>>, %arg9: memref<32x1xf32, #tpu.memory_space<vmem>>, %arg10: memref<1x32x256xf32, #tpu.memory_space<vmem>>) attributes {dimension_semantics = [#tpu.dimension_semantics<parallel>, #tpu.dimension_semantics<parallel>], iteration_bounds = array<i64: 2, 1>, scalar_prefetch = 0 : i64, scratch_operands = 0 : i64, tpu.core_type = #tpu.core_type<tc>, window_params = [{transform_indices = @transform_0, window_bounds = array<i64: 3>}, {transform_indices = @transform_1, window_bounds = array<i64: 1, 8, 256>}, {pipeline_mode = #tpu.pipeline_mode<synchronous>, transform_indices = @transform_2, window_bounds = array<i64: 32, 8>}, {pipeline_mode = #tpu.pipeline_mode<synchronous>, transform_indices = @transform_3, window_bounds = array<i64: 32, 1>}, {pipeline_mode = #tpu.pipeline_mode<synchronous>, transform_indices = @transform_4, window_bounds = array<i64: 8, 32>}, {pipeline_mode = #tpu.pipeline_mode<synchronous>, transform_indices = @transform_5, window_bounds = array<i64: 8, 1>}, {pipeline_mode = #tpu.pipeline_mode<synchronous>, transform_indices = @transform_6, window_bounds = array<i64: 32, 8>}, {pipeline_mode = #tpu.pipeline_mode<synchronous>, transform_indices = @transform_7, window_bounds = array<i64: 32, 1>}, {transform_indices = @transform_8, window_bounds = array<i64: 1, 32, 256>}]} {
    %c0 = arith.constant 0 : index
    %0 = memref.load %arg2[%c0] : memref<3xf32, #tpu.memory_space<smem>>
    %c1 = arith.constant 1 : index
    %1 = memref.load %arg2[%c1] : memref<3xf32, #tpu.memory_space<smem>>
    %c2 = arith.constant 2 : index
    %2 = memref.load %arg2[%c2] : memref<3xf32, #tpu.memory_space<smem>>
    %c0_0 = arith.constant 0 : index
    %c0_1 = arith.constant 0 : index
    %c0_2 = arith.constant 0 : index
    %3 = vector.load %arg3[%c0_0, %c0_1, %c0_2] : memref<1x8x256xf32, #tpu.memory_space<vmem>>, vector<1x8x256xf32>
    %4 = vector.shape_cast %3 : vector<1x8x256xf32> to vector<8x256xf32>
    %c0_3 = arith.constant 0 : index
    %c0_4 = arith.constant 0 : index
    %5 = vector.load %arg4[%c0_3, %c0_4] : memref<32x8xbf16, #tpu.memory_space<vmem>>, vector<32x8xbf16>
    %6 = arith.truncf %4 : vector<8x256xf32> to vector<8x256xbf16>
    %cst = arith.constant dense<0.000000e+00> : vector<32x256xf32>
    %7 = tpu.matmul %5, %6, %cst {dimension_numbers = #tpu.dot_dimension_numbers<[1], [0], [0], [1], [0, 0, 1, 1], [], []>} : vector<32x8xbf16>, vector<8x256xbf16>, vector<32x256xf32> -> vector<32x256xf32>
    %c0_5 = arith.constant 0 : index
    %c0_6 = arith.constant 0 : index
    %8 = vector.load %arg5[%c0_5, %c0_6] : memref<32x1xf32, #tpu.memory_space<vmem>>, vector<32x1xf32>
    %9 = vector.broadcast %8 : vector<32x1xf32> to vector<32x256xf32>
    %10 = arith.addf %7, %9 : vector<32x256xf32>
    %cst_7 = arith.constant 0.000000e+00 : f32
    %11 = vector.broadcast %cst_7 : f32 to vector<32x256xf32>
    %12 = arith.cmpf ogt, %10, %11 : vector<32x256xf32>
    %13 = vector.broadcast %0 : f32 to vector<32x256xf32>
    %14 = arith.mulf %13, %10 : vector<32x256xf32>
    %15 = arith.select %12, %10, %14 : vector<32x256xi1>, vector<32x256xf32>
    %c0_8 = arith.constant 0 : index
    %c0_9 = arith.constant 0 : index
    %16 = vector.load %arg6[%c0_8, %c0_9] : memref<8x32xbf16, #tpu.memory_space<vmem>>, vector<8x32xbf16>
    %17 = arith.truncf %15 : vector<32x256xf32> to vector<32x256xbf16>
    %cst_10 = arith.constant dense<0.000000e+00> : vector<8x256xf32>
    %18 = tpu.matmul %16, %17, %cst_10 {dimension_numbers = #tpu.dot_dimension_numbers<[1], [0], [0], [1], [0, 0, 1, 1], [], []>} : vector<8x32xbf16>, vector<32x256xbf16>, vector<8x256xf32> -> vector<8x256xf32>
    %c0_11 = arith.constant 0 : index
    %c0_12 = arith.constant 0 : index
    %19 = vector.load %arg7[%c0_11, %c0_12] : memref<8x1xf32, #tpu.memory_space<vmem>>, vector<8x1xf32>
    %20 = vector.broadcast %19 : vector<8x1xf32> to vector<8x256xf32>
    %21 = arith.addf %18, %20 : vector<8x256xf32>
    %cst_13 = arith.constant 0.000000e+00 : f32
    %22 = vector.broadcast %cst_13 : f32 to vector<8x256xf32>
    %23 = arith.cmpf ogt, %21, %22 : vector<8x256xf32>
    %24 = vector.broadcast %1 : f32 to vector<8x256xf32>
    %25 = arith.mulf %24, %21 : vector<8x256xf32>
    %26 = arith.select %23, %21, %25 : vector<8x256xi1>, vector<8x256xf32>
    %27 = arith.subf %26, %4 : vector<8x256xf32>
    %c0_14 = arith.constant 0 : index
    %c0_15 = arith.constant 0 : index
    %28 = vector.load %arg8[%c0_14, %c0_15] : memref<32x8xbf16, #tpu.memory_space<vmem>>, vector<32x8xbf16>
    %29 = arith.truncf %27 : vector<8x256xf32> to vector<8x256xbf16>
    %cst_16 = arith.constant dense<0.000000e+00> : vector<32x256xf32>
    %30 = tpu.matmul %28, %29, %cst_16 {dimension_numbers = #tpu.dot_dimension_numbers<[1], [0], [0], [1], [0, 0, 1, 1], [], []>} : vector<32x8xbf16>, vector<8x256xbf16>, vector<32x256xf32> -> vector<32x256xf32>
    %c0_17 = arith.constant 0 : index
    %c0_18 = arith.constant 0 : index
    %31 = vector.load %arg9[%c0_17, %c0_18] : memref<32x1xf32, #tpu.memory_space<vmem>>, vector<32x1xf32>
    %32 = vector.broadcast %31 : vector<32x1xf32> to vector<32x256xf32>
    %33 = arith.addf %30, %32 : vector<32x256xf32>
    %cst_19 = arith.constant 0.000000e+00 : f32
    %34 = vector.broadcast %cst_19 : f32 to vector<32x256xf32>
    %35 = arith.cmpf ogt, %33, %34 : vector<32x256xf32>
    %36 = vector.broadcast %2 : f32 to vector<32x256xf32>
    %37 = arith.mulf %36, %33 : vector<32x256xf32>
    %38 = arith.select %35, %33, %37 : vector<32x256xi1>, vector<32x256xf32>
    %39 = arith.addf %15, %38 : vector<32x256xf32>
    %c0_20 = arith.constant 0 : index
    %c0_21 = arith.constant 0 : index
    %c0_22 = arith.constant 0 : index
    %40 = vector.load %arg10[%c0_20, %c0_21, %c0_22] : memref<1x32x256xf32, #tpu.memory_space<vmem>>, vector<1x32x256xf32>
    %41 = vector.shape_cast %40 : vector<1x32x256xf32> to vector<32x256xf32>
    %42 = vector.shape_cast %39 : vector<32x256xf32> to vector<1x32x256xf32>
    tpu.vector_store %arg10[%c0_20, %c0_21, %c0_22], %42 {strides = array<i32>} : memref<1x32x256xf32, #tpu.memory_space<vmem>>, vector<1x32x256xf32>,
    return
  }
  func.func @transform_0(%arg0: i32, %arg1: i32) -> i32 {
    %c0_i32 = arith.constant 0 : i32
    %c0_i32_0 = arith.constant 0 : i32
    return %c0_i32 : i32
  }
  func.func @transform_1(%arg0: i32, %arg1: i32) -> (i32, i32, i32) {
    %c0_i32 = arith.constant 0 : i32
    %c0_i32_0 = arith.constant 0 : i32
    return %arg0, %c0_i32, %arg1 : i32, i32, i32
  }
  func.func @transform_2(%arg0: i32, %arg1: i32) -> (i32, i32) {
    %c0_i32 = arith.constant 0 : i32
    %c0_i32_0 = arith.constant 0 : i32
    %c0_i32_1 = arith.constant 0 : i32
    return %c0_i32, %c0_i32_0 : i32, i32
  }
  func.func @transform_3(%arg0: i32, %arg1: i32) -> (i32, i32) {
    %c0_i32 = arith.constant 0 : i32
    %c0_i32_0 = arith.constant 0 : i32
    %c0_i32_1 = arith.constant 0 : i32
    return %c0_i32, %c0_i32_0 : i32, i32
  }
  func.func @transform_4(%arg0: i32, %arg1: i32) -> (i32, i32) {
    %c0_i32 = arith.constant 0 : i32
    %c0_i32_0 = arith.constant 0 : i32
    %c0_i32_1 = arith.constant 0 : i32
    return %c0_i32, %c0_i32_0 : i32, i32
  }
  func.func @transform_5(%arg0: i32, %arg1: i32) -> (i32, i32) {
    %c0_i32 = arith.constant 0 : i32
    %c0_i32_0 = arith.constant 0 : i32
    %c0_i32_1 = arith.constant 0 : i32
    return %c0_i32, %c0_i32_0 : i32, i32
  }
  func.func @transform_6(%arg0: i32, %arg1: i32) -> (i32, i32) {
    %c0_i32 = arith.constant 0 : i32
    %c0_i32_0 = arith.constant 0 : i32
    %c0_i32_1 = arith.constant 0 : i32
    return %c0_i32, %c0_i32_0 : i32, i32
  }
  func.func @transform_7(%arg0: i32, %arg1: i32) -> (i32, i32) {
    %c0_i32 = arith.constant 0 : i32
    %c0_i32_0 = arith.constant 0 : i32
    %c0_i32_1 = arith.constant 0 : i32
    return %c0_i32, %c0_i32_0 : i32, i32
  }
  func.func @transform_8(%arg0: i32, %arg1: i32) -> (i32, i32, i32) {
    %c0_i32 = arith.constant 0 : i32
    %c0_i32_0 = arith.constant 0 : i32
    return %arg0, %c0_i32, %arg1 : i32, i32, i32
  }
}

</mosaic_0001>

<llo_original>
// kernel: tile.13
$region0: #{tile.13}
  #allocation0 [shape = 's32[1]{0}', space=sflag, size = 0x4, scoped, tag = 'scoped memory for tile.13']
  %s0 = inlined_call_operand.vmem [shape: f32[8], index: 0, kind: input, shape index: {}]
  %s1 = inlined_call_operand.vmem [shape: f32[4,8], index: 1, kind: output, shape index: {}]
  // Predicated region
  $region2: #{tile.13} parent=0 // pred_check
    _
  $region3: #{tile.13} parent=0 // pred_check_branch
    %3 = sbr.rel (0) target = $region5
  $region4: #{tile.13} parent=0 // pred_region
    _
  $region5: #{tile.13} parent=0 // pred_fallthru
    _
  %v4 = vld [vmem:[%s0] ss:$0 sm:$0xff]
  %5 = vst [vmem:[%s1] sm:$0xf] %v4

// kernel: tile.1
$region0: #{tile.1}
  %s0 = inlined_call_operand.vmem [shape: f32[4,8], index: 0, kind: input, shape index: {}]
  %s1 = inlined_call_operand.vmem [shape: f32[32,1], index: 1, kind: output, shape index: {}]
  $region1: #{tile.1} parent=0
    #allocation0 [shape = 'u8[4096]{0}', space=vmem, size = 0x1000, scoped, tag = 'scoped mem for input reshape']
    %s3 = ssub.s32 16, 1
    %v4 = vld [vmem:[%s0] sm:%s3]
    %5 = vst [vmem:[#allocation0] sm:%s3] %v4
    %v6 = vld [vmem:[#allocation0] sm:$0xf]
    %vm7 = vcmask 7168
    %8 = vst.msk [vmem:[%s1] ss:$8 sm:$0xf] %vm7, %v6
    %v9 = vld [vmem:[#allocation0] sm:$0xf]
    %10 = vrot.lane.b32.xlu0 %v9, 127
    %v11 = vpop.permute.xlu0 %10
    %vm12 = vcmask 7168
    %s13 = scalar_lea.vmem %s1, 1
    %14 = vst.msk [vmem:[%s13] ss:$8 sm:$0xf] %vm12, %v11
    %v15 = vld [vmem:[#allocation0] sm:$0xf]
    %16 = vrot.lane.b32.xlu0 %v15, 126
    %v17 = vpop.permute.xlu0 %16
    %vm18 = vcmask 7168
    %s19 = scalar_lea.vmem %s1, 2
    %20 = vst.msk [vmem:[%s19] ss:$8 sm:$0xf] %vm18, %v17
    %v21 = vld [vmem:[#allocation0] sm:$0xf]
    %22 = vrot.lane.b32.xlu0 %v21, 125
    %v23 = vpop.permute.xlu0 %22
    %vm24 = vcmask 7168
    %s25 = scalar_lea.vmem %s1, 3
    %26 = vst.msk [vmem:[%s25] ss:$8 sm:$0xf] %vm24, %v23
    %v27 = vld [vmem:[#allocation0] sm:$0xf]
    %28 = vrot.lane.b32.xlu0 %v27, 124
    %v29 = vpop.permute.xlu0 %28
    %vm30 = vcmask 7168
    %s31 = scalar_lea.vmem %s1, 4
    %32 = vst.msk [vmem:[%s31] ss:$8 sm:$0xf] %vm30, %v29
    %v33 = vld [vmem:[#allocation0] sm:$0xf]
    %34 = vrot.lane.b32.xlu0 %v33, 123
    %v35 = vpop.permute.xlu0 %34
    %vm36 = vcmask 7168
    %s37 = scalar_lea.vmem %s1, 5
    %38 = vst.msk [vmem:[%s37] ss:$8 sm:$0xf] %vm36, %v35
    %v39 = vld [vmem:[#allocation0] sm:$0xf]
    %40 = vrot.lane.b32.xlu0 %v39, 122
    %v41 = vpop.permute.xlu0 %40
    %vm42 = vcmask 7168
    %s43 = scalar_lea.vmem %s1, 6
    %44 = vst.msk [vmem:[%s43] ss:$8 sm:$0xf] %vm42, %v41
    %v45 = vld [vmem:[#allocation0] sm:$0xf]
    %46 = vrot.lane.b32.xlu0 %v45, 121
    %v47 = vpop.permute.xlu0 %46
    %vm48 = vcmask 7168
    %s49 = scalar_lea.vmem %s1, 7
    %50 = vst.msk [vmem:[%s49] ss:$8 sm:$0xf] %vm48, %v47

// kernel: up_projection_unit.1
$region0: #{up_projection_unit.1}
  #allocation0 [shape = 'u32[]', space=smem, size = 0x4, offset = 0x4, fixed_abs, tag = 'smem constant byte address 0x4 - core index']
  #allocation1 [shape = 'u32[72,128]{1,0:T(1,128)}', space=vmem, size = 0x9000, scoped, tag = 'internal scratch']
  %s0 = inlined_call_operand.vmem [shape: f32[3], index: 0, kind: input, shape index: {}]
  %s1 = inlined_call_operand.vmem [shape: f32[2,8,256], index: 1, kind: input, shape index: {}]
  %s2 = inlined_call_operand.vmem [shape: bf16[32,8], index: 2, kind: input, shape index: {}]
  %s3 = inlined_call_operand.vmem [shape: f32[32,1], index: 3, kind: input, shape index: {}]
  %s4 = inlined_call_operand.vmem [shape: bf16[8,32], index: 4, kind: input, shape index: {}]
  %s5 = inlined_call_operand.vmem [shape: f32[8,1], index: 5, kind: input, shape index: {}]
  %s6 = inlined_call_operand.vmem [shape: bf16[32,8], index: 6, kind: input, shape index: {}]
  %s7 = inlined_call_operand.vmem [shape: f32[32,1], index: 7, kind: input, shape index: {}]
  %s8 = inlined_call_operand.vmem [shape: f32[2,32,256], index: 8, kind: output, shape index: {}]
  %s9 = sld [smem:[#allocation0]]
  $region69: #{up_projection_unit.1} parent=0
    _
  %s11 = ssub.s32 1, %s9
  %s12 = scalar_select 0, %s11, %s9
  $region1: #{up_projection_unit.1} parent=0
    #allocation2 [shape = 'u8[512]{0}', space=smem, size = 0x200, scoped, tag = 'input window, operand 0, single buffered']
    #allocation3 [shape = 's32[2]{0}', space=sflag, size = 0x8, scoped, tag = 'scoped memory for up_projection_unit.1']
    %13 = vsyncpa [#allocation3], 0
    loop: start=0, step=1, limit=4
    $region2: #{up_projection_unit.1} parent=1 // loop_pre_header
      _
    $region3: #{up_projection_unit.1} parent=1 // loop_header
      %s15 = sphi 0, %s19
      %p16 = scmp.ge.s32.totalorder %s15, 4
      %s22 = sphi 0, %s34
      %s23 = sphi 0, %s30
      %s24 = sphi 0, %s22
      %s25 = sphi 0, %s23
      %s26 = sphi 0, %s24
      %s27 = sphi 0, %s25
      %s35 = sphi 0, %s35
      %s37 = sphi 0, %s35
      %s38 = sphi 0, %s37
      %s52 = sphi 0, %s38
      %s60 = sphi 0, %s62
      %s63 = sphi 0, %s60
      %s64 = sphi 0, %s63
      %s80 = sphi 0, %s64
      %s84 = sphi 0, %s84
      %s86 = sphi 0, %s84
      %s87 = sphi 0, %s86
      %s101 = sphi 0, %s87
      %s105 = sphi 0, %s105
      %s107 = sphi 0, %s105
      %s108 = sphi 0, %s107
      %s122 = sphi 0, %s108
      %s126 = sphi 0, %s126
      %s128 = sphi 0, %s126
      %s129 = sphi 0, %s128
      %s143 = sphi 0, %s129
      %s147 = sphi 0, %s147
      %s149 = sphi 0, %s147
      %s150 = sphi 0, %s149
      %s164 = sphi 0, %s150
      %s168 = sphi 0, %s168
      %s170 = sphi 0, %s168
      %s171 = sphi 0, %s170
      %s185 = sphi 0, %s171
      %s189 = sphi 0, %s189
      %s191 = sphi 0, %s189
      %s192 = sphi 0, %s191
      %s206 = sphi 0, %s192
      %s214 = sphi 0, %s216
      %s217 = sphi 0, %s214
      %s218 = sphi 0, %s217
      %s234 = sphi 0, %s218
    $region4: #{up_projection_unit.1} parent=1 // loop_header_branch
      %18 = sbr.rel (%p16) target = $region8
    $region5: #{up_projection_unit.1} parent=1 // loop_body
      %s20 = ssub.s32 %s15, 1
      %s21 = ssub.s32 %s15, 2
      %s28 = sadd.s32 1, %s23
      %p29 = scmp.ge.s32.totalorder %s28, 1
      %s30 = scalar_select %p29, 0, %s28
      %s31 = sadd.s32 1, %s22
      %s32 = scalar_select %p29, %s31, %s22
      %p33 = scmp.ge.s32.totalorder %s32, 2
      %s34 = scalar_select %p33, 0, %s32
      %s36 = sadd.s32 %s35, 1
      %p39 = scmp.eq.s32.totalorder %s15, 1
      %p40 = scmp.ne.s32.totalorder %s35, %s37
      %p41 = scmp.eq.s32.totalorder %s15, 0
      %p42 = por %p40, %p41
      %p43 = scmp.ne.s32.totalorder %s35, %s37
      %p44 = scmp.eq.s32.totalorder %s20, 1
      %p45 = por %p43, %p44
      %p46 = scmp.ne.s32.totalorder %s37, %s38
      %p47 = scmp.eq.s32.totalorder %s20, 0
      %p48 = por %p46, %p47
      %p49 = scmp.ne.s32.totalorder %s37, %s38
      %p50 = scmp.eq.s32.totalorder %s21, 1
      %p51 = por %p49, %p50
      %p53 = scmp.ne.s32.totalorder %s38, %s52
      %p54 = scmp.eq.s32.totalorder %s21, 0
      %p55 = por %p53, %p54
      %s56 = ssub.s32 %s22, %s34
      %s57 = ssub.s32 %s23, %s30
      %s58 = sor.u32 %s56, %s57
      %p59 = scmp.eq.s32.totalorder %s58, 0
      %s61 = sadd.s32 %s60, 1
      %s62 = scalar_select %p59, %s60, %s61
      %p65 = pneg %p59
      %p66 = scmp.eq.s32.totalorder %s15, 1
      %p67 = por %p65, %p66
      %p68 = scmp.ne.s32.totalorder %s60, %s63
      %p69 = scmp.eq.s32.totalorder %s15, 0
      %p70 = por %p68, %p69
      %p71 = scmp.ne.s32.totalorder %s60, %s63
      %p72 = scmp.eq.s32.totalorder %s20, 1
      %p73 = por %p71, %p72
      %p74 = scmp.ne.s32.totalorder %s63, %s64
      %p75 = scmp.eq.s32.totalorder %s20, 0
      %p76 = por %p74, %p75
      %p77 = scmp.ne.s32.totalorder %s63, %s64
      %p78 = scmp.eq.s32.totalorder %s21, 1
      %p79 = por %p77, %p78
      %p81 = scmp.ne.s32.totalorder %s64, %s80
      %p82 = scmp.eq.s32.totalorder %s21, 0
      %p83 = por %p81, %p82
      %s85 = sadd.s32 %s84, 1
      %p88 = scmp.eq.s32.totalorder %s15, 1
      %p89 = scmp.ne.s32.totalorder %s84, %s86
      %p90 = scmp.eq.s32.totalorder %s15, 0
      %p91 = por %p89, %p90
      %p92 = scmp.ne.s32.totalorder %s84, %s86
      %p93 = scmp.eq.s32.totalorder %s20, 1
      %p94 = por %p92, %p93
      %p95 = scmp.ne.s32.totalorder %s86, %s87
      %p96 = scmp.eq.s32.totalorder %s20, 0
      %p97 = por %p95, %p96
      %p98 = scmp.ne.s32.totalorder %s86, %s87
      %p99 = scmp.eq.s32.totalorder %s21, 1
      %p100 = por %p98, %p99
      %p102 = scmp.ne.s32.totalorder %s87, %s101
      %p103 = scmp.eq.s32.totalorder %s21, 0
      %p104 = por %p102, %p103
      %s106 = sadd.s32 %s105, 1
      %p109 = scmp.eq.s32.totalorder %s15, 1
      %p110 = scmp.ne.s32.totalorder %s105, %s107
      %p111 = scmp.eq.s32.totalorder %s15, 0
      %p112 = por %p110, %p111
      %p113 = scmp.ne.s32.totalorder %s105, %s107
      %p114 = scmp.eq.s32.totalorder %s20, 1
      %p115 = por %p113, %p114
      %p116 = scmp.ne.s32.totalorder %s107, %s108
      %p117 = scmp.eq.s32.totalorder %s20, 0
      %p118 = por %p116, %p117
      %p119 = scmp.ne.s32.totalorder %s107, %s108
      %p120 = scmp.eq.s32.totalorder %s21, 1
      %p121 = por %p119, %p120
      %p123 = scmp.ne.s32.totalorder %s108, %s122
      %p124 = scmp.eq.s32.totalorder %s21, 0
      %p125 = por %p123, %p124
      %s127 = sadd.s32 %s126, 1
      %p130 = scmp.eq.s32.totalorder %s15, 1
      %p131 = scmp.ne.s32.totalorder %s126, %s128
      %p132 = scmp.eq.s32.totalorder %s15, 0
      %p133 = por %p131, %p132
      %p134 = scmp.ne.s32.totalorder %s126, %s128
      %p135 = scmp.eq.s32.totalorder %s20, 1
      %p136 = por %p134, %p135
      %p137 = scmp.ne.s32.totalorder %s128, %s129
      %p138 = scmp.eq.s32.totalorder %s20, 0
      %p139 = por %p137, %p138
      %p140 = scmp.ne.s32.totalorder %s128, %s129
      %p141 = scmp.eq.s32.totalorder %s21, 1
      %p142 = por %p140, %p141
      %p144 = scmp.ne.s32.totalorder %s129, %s143
      %p145 = scmp.eq.s32.totalorder %s21, 0
      %p146 = por %p144, %p145
      %s148 = sadd.s32 %s147, 1
      %p151 = scmp.eq.s32.totalorder %s15, 1
      %p152 = scmp.ne.s32.totalorder %s147, %s149
      %p153 = scmp.eq.s32.totalorder %s15, 0
      %p154 = por %p152, %p153
      %p155 = scmp.ne.s32.totalorder %s147, %s149
      %p156 = scmp.eq.s32.totalorder %s20, 1
      %p157 = por %p155, %p156
      %p158 = scmp.ne.s32.totalorder %s149, %s150
      %p159 = scmp.eq.s32.totalorder %s20, 0
      %p160 = por %p158, %p159
      %p161 = scmp.ne.s32.totalorder %s149, %s150
      %p162 = scmp.eq.s32.totalorder %s21, 1
      %p163 = por %p161, %p162
      %p165 = scmp.ne.s32.totalorder %s150, %s164
      %p166 = scmp.eq.s32.totalorder %s21, 0
      %p167 = por %p165, %p166
      %s169 = sadd.s32 %s168, 1
      %p172 = scmp.eq.s32.totalorder %s15, 1
      %p173 = scmp.ne.s32.totalorder %s168, %s170
      %p174 = scmp.eq.s32.totalorder %s15, 0
      %p175 = por %p173, %p174
      %p176 = scmp.ne.s32.totalorder %s168, %s170
      %p177 = scmp.eq.s32.totalorder %s20, 1
      %p178 = por %p176, %p177
      %p179 = scmp.ne.s32.totalorder %s170, %s171
      %p180 = scmp.eq.s32.totalorder %s20, 0
      %p181 = por %p179, %p180
      %p182 = scmp.ne.s32.totalorder %s170, %s171
      %p183 = scmp.eq.s32.totalorder %s21, 1
      %p184 = por %p182, %p183
      %p186 = scmp.ne.s32.totalorder %s171, %s185
      %p187 = scmp.eq.s32.totalorder %s21, 0
      %p188 = por %p186, %p187
      %s190 = sadd.s32 %s189, 1
      %p193 = scmp.eq.s32.totalorder %s15, 1
      %p194 = scmp.ne.s32.totalorder %s189, %s191
      %p195 = scmp.eq.s32.totalorder %s15, 0
      %p196 = por %p194, %p195
      %p197 = scmp.ne.s32.totalorder %s189, %s191
      %p198 = scmp.eq.s32.totalorder %s20, 1
      %p199 = por %p197, %p198
      %p200 = scmp.ne.s32.totalorder %s191, %s192
      %p201 = scmp.eq.s32.totalorder %s20, 0
      %p202 = por %p200, %p201
      %p203 = scmp.ne.s32.totalorder %s191, %s192
      %p204 = scmp.eq.s32.totalorder %s21, 1
      %p205 = por %p203, %p204
      %p207 = scmp.ne.s32.totalorder %s192, %s206
      %p208 = scmp.eq.s32.totalorder %s21, 0
      %p209 = por %p207, %p208
      %s210 = ssub.s32 %s22, %s34
      %s211 = ssub.s32 %s23, %s30
      %s212 = sor.u32 %s210, %s211
      %p213 = scmp.eq.s32.totalorder %s212, 0
      %s215 = sadd.s32 %s214, 1
      %s216 = scalar_select %p213, %s214, %s215
      %p219 = pneg %p213
      %p220 = scmp.eq.s32.totalorder %s15, 1
      %p221 = por %p219, %p220
      %p222 = scmp.ne.s32.totalorder %s214, %s217
      %p223 = scmp.eq.s32.totalorder %s15, 0
      %p224 = por %p222, %p223
      %p225 = scmp.ne.s32.totalorder %s214, %s217
      %p226 = scmp.eq.s32.totalorder %s20, 1
      %p227 = por %p225, %p226
      %p228 = scmp.ne.s32.totalorder %s217, %s218
      %p229 = scmp.eq.s32.totalorder %s20, 0
      %p230 = por %p228, %p229
      %p231 = scmp.ne.s32.totalorder %s217, %s218
      %p232 = scmp.eq.s32.totalorder %s21, 1
      %p233 = por %p231, %p232
      %p235 = scmp.ne.s32.totalorder %s218, %s234
      %p236 = scmp.eq.s32.totalorder %s21, 0
      %p237 = por %p235, %p236
      %p238 = scmp.le.s32.totalorder 1, %s15
      %p239 = scmp.lt.s32.totalorder %s15, 3
      %p240 = pnand %p238, %p239
      %p241 = pneg %p240
      // Predicated region
      $region9: #{up_projection_unit.1} parent=5 // pred_check
        _
      $region10: #{up_projection_unit.1} parent=5 // pred_check_branch
        %243 = sbr.rel (%p240) target = $region12
      $region11: #{up_projection_unit.1} parent=5 // pred_region
        %s244 = ssub.s32 %s15, 1
        // Predicated region
        $region13: #{up_projection_unit.1} parent=11 // pred_check
          %p245 = pneg %p48
        $region14: #{up_projection_unit.1} parent=11 // pred_check_branch
          %247 = sbr.rel (%p245) target = $region16
        $region15: #{up_projection_unit.1} parent=11 // pred_region
          %249 = vsyncadd [#allocation3], 0
          %s251 = sshll.u32 %s0, 4
          %s252 = int_to_ptr.vmem [resolvable:$true] %s251
          %254 = dma.vmem_to_smem %s252, 16, [#allocation2], [#allocation3]
        $region16: #{up_projection_unit.1} parent=11 // pred_fallthru
          _
        // Predicated region
        $region17: #{up_projection_unit.1} parent=11 // pred_check
          %p255 = pneg %p97
        $region18: #{up_projection_unit.1} parent=11 // pred_check_branch
          %257 = sbr.rel (%p255) target = $region20
        $region19: #{up_projection_unit.1} parent=11 // pred_region
          _
        $region20: #{up_projection_unit.1} parent=11 // pred_fallthru
          _
        // Predicated region
        $region21: #{up_projection_unit.1} parent=11 // pred_check
          %p258 = pneg %p118
        $region22: #{up_projection_unit.1} parent=11 // pred_check_branch
          %260 = sbr.rel (%p258) target = $region24
        $region23: #{up_projection_unit.1} parent=11 // pred_region
          _
        $region24: #{up_projection_unit.1} parent=11 // pred_fallthru
          _
        // Predicated region
        $region25: #{up_projection_unit.1} parent=11 // pred_check
          %p261 = pneg %p139
        $region26: #{up_projection_unit.1} parent=11 // pred_check_branch
          %263 = sbr.rel (%p261) target = $region28
        $region27: #{up_projection_unit.1} parent=11 // pred_region
          _
        $region28: #{up_projection_unit.1} parent=11 // pred_fallthru
          _
        // Predicated region
        $region29: #{up_projection_unit.1} parent=11 // pred_check
          %p264 = pneg %p160
        $region30: #{up_projection_unit.1} parent=11 // pred_check_branch
          %266 = sbr.rel (%p264) target = $region32
        $region31: #{up_projection_unit.1} parent=11 // pred_region
          _
        $region32: #{up_projection_unit.1} parent=11 // pred_fallthru
          _
        // Predicated region
        $region33: #{up_projection_unit.1} parent=11 // pred_check
          %p267 = pneg %p181
        $region34: #{up_projection_unit.1} parent=11 // pred_check_branch
          %269 = sbr.rel (%p267) target = $region36
        $region35: #{up_projection_unit.1} parent=11 // pred_region
          _
        $region36: #{up_projection_unit.1} parent=11 // pred_fallthru
          _
        // Predicated region
        $region37: #{up_projection_unit.1} parent=11 // pred_check
          %p270 = pneg %p202
        $region38: #{up_projection_unit.1} parent=11 // pred_check_branch
          %272 = sbr.rel (%p270) target = $region40
        $region39: #{up_projection_unit.1} parent=11 // pred_region
          _
        $region40: #{up_projection_unit.1} parent=11 // pred_fallthru
          _
      $region12: #{up_projection_unit.1} parent=5 // pred_fallthru
        _
      %p273 = scmp.lt.s32.totalorder %s15, 2
      // Predicated region
      $region41: #{up_projection_unit.1} parent=5 // pred_check
        %p274 = pneg %p273
      $region42: #{up_projection_unit.1} parent=5 // pred_check_branch
        %276 = sbr.rel (%p274) target = $region44
      $region43: #{up_projection_unit.1} parent=5 // pred_region
        // Predicated region
        $region45: #{up_projection_unit.1} parent=43 // pred_check
          %p277 = pneg %p70
        $region46: #{up_projection_unit.1} parent=43 // pred_check_branch
          %279 = sbr.rel (%p277) target = $region48
        $region47: #{up_projection_unit.1} parent=43 // pred_region
          %s280 = smul.u32 2, %s23
          %p281 = scmp.lt.s32.totalorder %s22, 1
          %s282 = scalar_select %p281, %s22, 1
          %p283 = scmp.lt.s32.totalorder %s280, 1
          %s284 = scalar_select %p283, %s280, 1
          %s285 = smul.addr %s282, 2
          %s286 = sadd.s32 %s284, %s285
          %s287 = smul.addr %s286, 8
          %s288 = scalar_lea.vmem %s1, %s287
          %s289 = smul.u32 2, %s23
        $region48: #{up_projection_unit.1} parent=43 // pred_fallthru
          _
      $region44: #{up_projection_unit.1} parent=5 // pred_fallthru
        _
      %p290 = scmp.le.s32.totalorder 1, %s15
      %p291 = scmp.lt.s32.totalorder %s15, 3
      %p292 = pnand %p290, %p291
      %p293 = pneg %p292
      // Predicated region
      $region49: #{up_projection_unit.1} parent=5 // pred_check
        _
      $region50: #{up_projection_unit.1} parent=5 // pred_check_branch
        %295 = sbr.rel (%p292) target = $region52
      $region51: #{up_projection_unit.1} parent=5 // pred_region
        %s296 = ssub.s32 %s15, 1
        // Predicated region
        $region53: #{up_projection_unit.1} parent=51 // pred_check
          %p297 = pneg %p48
        $region54: #{up_projection_unit.1} parent=51 // pred_check_branch
          %299 = sbr.rel (%p297) target = $region56
        $region55: #{up_projection_unit.1} parent=51 // pred_region
          %301 = dma.done [#allocation3], 16
        $region56: #{up_projection_unit.1} parent=51 // pred_fallthru
          _
        %302 = sfence
        %p303 = pneg %p48
        %p304 = pneg %p45
        %s305 = smul.u32 2, %s25
        %p306 = scmp.lt.s32.totalorder %s24, 1
        %s307 = scalar_select %p306, %s24, 1
        %p308 = scmp.lt.s32.totalorder %s305, 1
        %s309 = scalar_select %p308, %s305, 1
        %s310 = smul.addr %s307, 2
        %s311 = sadd.s32 %s309, %s310
        %s312 = smul.addr %s311, 8
        %s313 = scalar_lea.vmem %s1, %s312
        %p314 = pneg %p76
        %p315 = pneg %p73
        %p316 = pneg %p97
        %p317 = pneg %p94
        %p318 = pneg %p118
        %p319 = pneg %p115
        %p320 = pneg %p139
        %p321 = pneg %p136
        %p322 = pneg %p160
        %p323 = pneg %p157
        %p324 = pneg %p181
        %p325 = pneg %p178
        %p326 = pneg %p202
        %p327 = pneg %p199
        %p328 = pneg %p230
        %p329 = pneg %p227
        %s330 = smul.u32 2, %s25
        %p331 = scmp.lt.s32.totalorder %s24, 1
        %s332 = scalar_select %p331, %s24, 1
        %p333 = scmp.lt.s32.totalorder %s330, 1
        %s334 = scalar_select %p333, %s330, 1
        %s335 = smul.addr %s332, 8
        %s336 = sadd.s32 %s334, %s335
        %s337 = smul.addr %s336, 8
        %s338 = scalar_lea.vmem %s8, %s337
        %s339 = smul.u32 2, %s25
        %p340 = scmp.lt.s32.totalorder %s24, 1
        %s341 = scalar_select %p340, %s24, 1
        %p342 = scmp.lt.s32.totalorder %s339, 1
        %s343 = scalar_select %p342, %s339, 1
        %s344 = smul.addr %s341, 2
        %s345 = sadd.s32 %s343, %s344
        %s346 = smul.addr %s345, 8
        %s347 = scalar_lea.vmem %s1, %s346
        %s348 = smul.u32 2, %s25
        %s349 = smul.u32 2, %s25
        %p350 = scmp.lt.s32.totalorder %s24, 1
        %s351 = scalar_select %p350, %s24, 1
        %p352 = scmp.lt.s32.totalorder %s349, 1
        %s353 = scalar_select %p352, %s349, 1
        %s354 = smul.addr %s351, 8
        %s355 = sadd.s32 %s353, %s354
        %s356 = smul.addr %s355, 8
        %s357 = scalar_lea.vmem %s8, %s356
        %s358 = smul.u32 2, %s25
        %s360 = sld [smem:[#allocation2]]
        %s361 = sld [smem:[#allocation2 + $0x1]]
        %s362 = sld [smem:[#allocation2 + $0x2]]
        %v363 = vld [vmem:[%s347] sm:$0xff]
        %v364 = vld [vmem:[%s347 + $0x8] sm:$0xff]
        %v365 = vld [vmem:[%s2] sm:$0xf]
        %v366 = vld [vmem:[%s2 + $0x4] sm:$0xf]
        %v367 = vld [vmem:[%s2 + $0x8] sm:$0xf]
        %v368 = vld [vmem:[%s2 + $0xc] sm:$0xf]
        %v369 = vpack.c.bf16 %v363, %v363
        %v370 = vpack.c.bf16 %v364, %v364
        %v371 = vld [vmem:[%s3] sm:$0xff]
        %v372 = vld [vmem:[%s3 + $0x8] sm:$0xff]
        %v373 = vld [vmem:[%s3 + $0x10] sm:$0xff]
        %v374 = vld [vmem:[%s3 + $0x18] sm:$0xff]
        %376 = vset.pattern.permute.xlu0 0
        %377 = vperm.xlu0 %376, %v371
        %v378 = vpop.permute.xlu0 %377
        %381 = vset.pattern.permute.xlu0 0
        %382 = vperm.xlu0 %381, %v372
        %v383 = vpop.permute.xlu0 %382
        %386 = vset.pattern.permute.xlu0 0
        %387 = vperm.xlu0 %386, %v373
        %v388 = vpop.permute.xlu0 %387
        %391 = vset.pattern.permute.xlu0 0
        %392 = vperm.xlu0 %391, %v374
        %v393 = vpop.permute.xlu0 %392
        %v399 = vunpack.c.l.b16 %v365
        %v400 = vunpack.c.l.b16 %v366
        %v401 = vunpack.c.l.b16 %v367
        %v402 = vunpack.c.l.b16 %v368
        %v403 = vpack.c.b16 %v400, %v399
        %v404 = vpack.c.b16 %v402, %v401
        %vm405 = vcmask 64512
        %v407 = vsel %vm405, %v403, 0
        %v410 = vsel %vm405, %v404, 0
        %vm412 = vcmask 1043456
        %v414 = vsel %vm412, %v369, 0
        %v417 = vsel %vm412, %v370, 0
        %419 = vmatpush.bf16.msra.mxu0 0
        %420 = vmatpush.bf16.msra.mxu0 0
        %421 = vmatpush.bf16.msra.mxu0 0
        %422 = vmatpush.bf16.msra.mxu0 0
        %423 = vmatpush.bf16.msra.mxu0 0
        %424 = vmatpush.bf16.msra.mxu0 0
        %425 = vmatpush.bf16.msra.mxu0 0
        %426 = vmatpush.bf16.msra.mxu0 %v414
        %427 = vmatmul.bf16.gmra.mxu0 %v407
        %v428 = vpop.f32.mrf.mxu0
        %v429 = vadd.f32 %v378, %v428
        %v430 = vpop.f32.mrf.mxu0
        %v431 = vadd.f32 %v383, %v430
        %432 = vmatmul.bf16.gmra.mxu0 %v410
        %v433 = vpop.f32.mrf.mxu0
        %v434 = vadd.f32 %v388, %v433
        %v435 = vpop.f32.mrf.mxu0
        %v436 = vadd.f32 %v393, %v435
        %437 = vdwg.mxu0
        %438 = vmatpush.bf16.msra.mxu0 0
        %439 = vmatpush.bf16.msra.mxu0 0
        %440 = vmatpush.bf16.msra.mxu0 0
        %441 = vmatpush.bf16.msra.mxu0 0
        %442 = vmatpush.bf16.msra.mxu0 0
        %443 = vmatpush.bf16.msra.mxu0 0
        %444 = vmatpush.bf16.msra.mxu0 0
        %445 = vmatpush.bf16.msra.mxu0 %v417
        %446 = vmatmul.bf16.gmra.mxu0 %v407
        %v447 = vpop.f32.mrf.mxu0
        %v448 = vadd.f32 %v378, %v447
        %v449 = vpop.f32.mrf.mxu0
        %v450 = vadd.f32 %v383, %v449
        %451 = vmatmul.bf16.gmra.mxu0 %v410
        %v452 = vpop.f32.mrf.mxu0
        %v453 = vadd.f32 %v388, %v452
        %v454 = vpop.f32.mrf.mxu0
        %v455 = vadd.f32 %v393, %v454
        %456 = vdwg.mxu0
        %vm457 = vcmp.gt.f32.partialorder %v429, 0.0
        %vm458 = vcmp.gt.f32.partialorder %v448, 0.0
        %vm459 = vcmp.gt.f32.partialorder %v431, 0.0
        %vm460 = vcmp.gt.f32.partialorder %v450, 0.0
        %vm461 = vcmp.gt.f32.partialorder %v434, 0.0
        %vm462 = vcmp.gt.f32.partialorder %v453, 0.0
        %vm463 = vcmp.gt.f32.partialorder %v436, 0.0
        %vm464 = vcmp.gt.f32.partialorder %v455, 0.0
        %v465 = vstv %s360
        %v466 = vmul.f32 %v465, %v429
        %v467 = vmul.f32 %v465, %v448
        %v468 = vmul.f32 %v465, %v431
        %v469 = vmul.f32 %v465, %v450
        %v470 = vmul.f32 %v465, %v434
        %v471 = vmul.f32 %v465, %v453
        %v472 = vmul.f32 %v465, %v436
        %v473 = vmul.f32 %v465, %v455
        %v474 = vsel %vm457, %v429, %v466
        %v475 = vsel %vm458, %v448, %v467
        %v476 = vsel %vm459, %v431, %v468
        %v477 = vsel %vm460, %v450, %v469
        %v478 = vsel %vm461, %v434, %v470
        %v479 = vsel %vm462, %v453, %v471
        %v480 = vsel %vm463, %v436, %v472
        %v481 = vsel %vm464, %v455, %v473
        %v482 = vld [vmem:[%s4] sm:$0xf]
        %v483 = vpack.c.bf16 %v476, %v474
        %v484 = vpack.c.bf16 %v477, %v475
        %v485 = vpack.c.bf16 %v480, %v478
        %v486 = vpack.c.bf16 %v481, %v479
        %v487 = vld [vmem:[%s5] sm:$0xff]
        %489 = vset.pattern.permute.xlu0 0
        %490 = vperm.xlu0 %489, %v487
        %v491 = vpop.permute.xlu0 %490
        %vm493 = vcmask 261120
        %v495 = vsel %vm493, %v482, 0
        %497 = vmatpush.bf16.msra.mxu0 0
        %498 = vmatpush.bf16.msra.mxu0 0
        %499 = vmatpush.bf16.msra.mxu0 0
        %500 = vmatpush.bf16.msra.mxu0 0
        %501 = vmatpush.bf16.msra.mxu0 0
        %502 = vmatpush.bf16.msra.mxu0 0
        %503 = vmatpush.bf16.msra.mxu0 %v485
        %504 = vmatpush.bf16.msra.mxu0 %v483
        %505 = vmatmul.bf16.gmra.mxu0 %v495
        %v506 = vpop.f32.mrf.mxu0
        %v507 = vadd.f32 %v491, %v506
        %v508 = vpop.f32.mrf.mxu0
        %509 = vdwg.mxu0
        %510 = vmatpush.bf16.msra.mxu0 0
        %511 = vmatpush.bf16.msra.mxu0 0
        %512 = vmatpush.bf16.msra.mxu0 0
        %513 = vmatpush.bf16.msra.mxu0 0
        %514 = vmatpush.bf16.msra.mxu0 0
        %515 = vmatpush.bf16.msra.mxu0 0
        %516 = vmatpush.bf16.msra.mxu0 %v486
        %517 = vmatpush.bf16.msra.mxu0 %v484
        %518 = vmatmul.bf16.gmra.mxu0 %v495
        %v519 = vpop.f32.mrf.mxu0
        %v520 = vadd.f32 %v491, %v519
        %v521 = vpop.f32.mrf.mxu0
        %522 = vdwg.mxu0
        %vm523 = vcmp.gt.f32.partialorder %v507, 0.0
        %vm524 = vcmp.gt.f32.partialorder %v520, 0.0
        %v525 = vstv %s361
        %v526 = vmul.f32 %v525, %v507
        %v527 = vmul.f32 %v525, %v520
        %v528 = vsel %vm523, %v507, %v526
        %v529 = vsel %vm524, %v520, %v527
        %v530 = vsub.f32 %v528, %v363
        %v531 = vsub.f32 %v529, %v364
        %v532 = vld [vmem:[%s6] sm:$0xf]
        %v533 = vld [vmem:[%s6 + $0x4] sm:$0xf]
        %v534 = vld [vmem:[%s6 + $0x8] sm:$0xf]
        %v535 = vld [vmem:[%s6 + $0xc] sm:$0xf]
        %v536 = vpack.c.bf16 %v530, %v530
        %v537 = vpack.c.bf16 %v531, %v531
        %v538 = vld [vmem:[%s7] sm:$0xff]
        %v539 = vld [vmem:[%s7 + $0x8] sm:$0xff]
        %v540 = vld [vmem:[%s7 + $0x10] sm:$0xff]
        %v541 = vld [vmem:[%s7 + $0x18] sm:$0xff]
        %543 = vset.pattern.permute.xlu0 0
        %544 = vperm.xlu0 %543, %v538
        %v545 = vpop.permute.xlu0 %544
        %548 = vset.pattern.permute.xlu0 0
        %549 = vperm.xlu0 %548, %v539
        %v550 = vpop.permute.xlu0 %549
        %553 = vset.pattern.permute.xlu0 0
        %554 = vperm.xlu0 %553, %v540
        %v555 = vpop.permute.xlu0 %554
        %558 = vset.pattern.permute.xlu0 0
        %559 = vperm.xlu0 %558, %v541
        %v560 = vpop.permute.xlu0 %559
        %v566 = vunpack.c.l.b16 %v532
        %v567 = vunpack.c.l.b16 %v533
        %v568 = vunpack.c.l.b16 %v534
        %v569 = vunpack.c.l.b16 %v535
        %v570 = vpack.c.b16 %v567, %v566
        %v571 = vpack.c.b16 %v569, %v568
        %v573 = vsel %vm405, %v570, 0
        %v576 = vsel %vm405, %v571, 0
        %v579 = vsel %vm412, %v536, 0
        %v582 = vsel %vm412, %v537, 0
        %584 = vmatpush.bf16.msra.mxu0 0
        %585 = vmatpush.bf16.msra.mxu0 0
        %586 = vmatpush.bf16.msra.mxu0 0
        %587 = vmatpush.bf16.msra.mxu0 0
        %588 = vmatpush.bf16.msra.mxu0 0
        %589 = vmatpush.bf16.msra.mxu0 0
        %590 = vmatpush.bf16.msra.mxu0 0
        %591 = vmatpush.bf16.msra.mxu0 %v579
        %592 = vmatmul.bf16.gmra.mxu0 %v573
        %v593 = vpop.f32.mrf.mxu0
        %v594 = vadd.f32 %v545, %v593
        %v595 = vpop.f32.mrf.mxu0
        %v596 = vadd.f32 %v550, %v595
        %597 = vmatmul.bf16.gmra.mxu0 %v576
        %v598 = vpop.f32.mrf.mxu0
        %v599 = vadd.f32 %v555, %v598
        %v600 = vpop.f32.mrf.mxu0
        %v601 = vadd.f32 %v560, %v600
        %602 = vdwg.mxu0
        %603 = vmatpush.bf16.msra.mxu0 0
        %604 = vmatpush.bf16.msra.mxu0 0
        %605 = vmatpush.bf16.msra.mxu0 0
        %606 = vmatpush.bf16.msra.mxu0 0
        %607 = vmatpush.bf16.msra.mxu0 0
        %608 = vmatpush.bf16.msra.mxu0 0
        %609 = vmatpush.bf16.msra.mxu0 0
        %610 = vmatpush.bf16.msra.mxu0 %v582
        %611 = vmatmul.bf16.gmra.mxu0 %v573
        %v612 = vpop.f32.mrf.mxu0
        %v613 = vadd.f32 %v545, %v612
        %v614 = vpop.f32.mrf.mxu0
        %v615 = vadd.f32 %v550, %v614
        %616 = vmatmul.bf16.gmra.mxu0 %v576
        %v617 = vpop.f32.mrf.mxu0
        %v618 = vadd.f32 %v555, %v617
        %v619 = vpop.f32.mrf.mxu0
        %v620 = vadd.f32 %v560, %v619
        %621 = vdwg.mxu0
        %vm622 = vcmp.gt.f32.partialorder %v594, 0.0
        %vm623 = vcmp.gt.f32.partialorder %v613, 0.0
        %vm624 = vcmp.gt.f32.partialorder %v596, 0.0
        %vm625 = vcmp.gt.f32.partialorder %v615, 0.0
        %vm626 = vcmp.gt.f32.partialorder %v599, 0.0
        %vm627 = vcmp.gt.f32.partialorder %v618, 0.0
        %vm628 = vcmp.gt.f32.partialorder %v601, 0.0
        %vm629 = vcmp.gt.f32.partialorder %v620, 0.0
        %v630 = vstv %s362
        %v631 = vmul.f32 %v630, %v594
        %v632 = vmul.f32 %v630, %v613
        %v633 = vmul.f32 %v630, %v596
        %v634 = vmul.f32 %v630, %v615
        %v635 = vmul.f32 %v630, %v599
        %v636 = vmul.f32 %v630, %v618
        %v637 = vmul.f32 %v630, %v601
        %v638 = vmul.f32 %v630, %v620
        %v639 = vsel %vm622, %v594, %v631
        %v640 = vsel %vm623, %v613, %v632
        %v641 = vsel %vm624, %v596, %v633
        %v642 = vsel %vm625, %v615, %v634
        %v643 = vsel %vm626, %v599, %v635
        %v644 = vsel %vm627, %v618, %v636
        %v645 = vsel %vm628, %v601, %v637
        %v646 = vsel %vm629, %v620, %v638
        %v647 = vadd.f32 %v474, %v639
        %v648 = vadd.f32 %v475, %v640
        %v649 = vadd.f32 %v476, %v641
        %v650 = vadd.f32 %v477, %v642
        %v651 = vadd.f32 %v478, %v643
        %v652 = vadd.f32 %v479, %v644
        %v653 = vadd.f32 %v480, %v645
        %v654 = vadd.f32 %v481, %v646
        %655 = vst [vmem:[%s357] sm:$0xff] %v647
        %656 = vst [vmem:[%s357 + $0x8] sm:$0xff] %v648
        %657 = vst [vmem:[%s357 + $0x10] sm:$0xff] %v649
        %658 = vst [vmem:[%s357 + $0x18] sm:$0xff] %v650
        %659 = vst [vmem:[%s357 + $0x20] sm:$0xff] %v651
        %660 = vst [vmem:[%s357 + $0x28] sm:$0xff] %v652
        %661 = vst [vmem:[%s357 + $0x30] sm:$0xff] %v653
        %662 = vst [vmem:[%s357 + $0x38] sm:$0xff] %v654
        %s663 = smul.u32 2, %s25
        %p664 = scmp.lt.s32.totalorder %s24, 1
        %s665 = scalar_select %p664, %s24, 1
        %p666 = scmp.lt.s32.totalorder %s663, 1
        %s667 = scalar_select %p666, %s663, 1
        %s668 = smul.addr %s665, 8
        %s669 = sadd.s32 %s667, %s668
        %s670 = smul.addr %s669, 8
        %s671 = scalar_lea.vmem %s8, %s670
        // Predicated region
        $region57: #{up_projection_unit.1} parent=51 // pred_check
          %p672 = pneg %p227
        $region58: #{up_projection_unit.1} parent=51 // pred_check_branch
          %674 = sbr.rel (%p672) target = $region60
        $region59: #{up_projection_unit.1} parent=51 // pred_region
          %s675 = smul.u32 2, %s25
        $region60: #{up_projection_unit.1} parent=51 // pred_fallthru
          _
      $region52: #{up_projection_unit.1} parent=5 // pred_fallthru
        _
      %p676 = scmp.le.s32.totalorder 2, %s15
      // Predicated region
      $region61: #{up_projection_unit.1} parent=5 // pred_check
        %p677 = pneg %p676
      $region62: #{up_projection_unit.1} parent=5 // pred_check_branch
        %679 = sbr.rel (%p677) target = $region64
      $region63: #{up_projection_unit.1} parent=5 // pred_region
        %s680 = ssub.s32 %s15, 2
        // Predicated region
        $region65: #{up_projection_unit.1} parent=63 // pred_check
          %p681 = pneg %p233
        $region66: #{up_projection_unit.1} parent=63 // pred_check_branch
          %683 = sbr.rel (%p681) target = $region68
        $region67: #{up_projection_unit.1} parent=63 // pred_region
          %s684 = smul.u32 2, %s27
          %p685 = scmp.lt.s32.totalorder %s26, 1
          %s686 = scalar_select %p685, %s26, 1
          %p687 = scmp.lt.s32.totalorder %s684, 1
          %s688 = scalar_select %p687, %s684, 1
          %s689 = smul.addr %s686, 8
          %s690 = sadd.s32 %s688, %s689
          %s691 = smul.addr %s690, 8
          %s692 = scalar_lea.vmem %s8, %s691
        $region68: #{up_projection_unit.1} parent=63 // pred_fallthru
          _
      $region64: #{up_projection_unit.1} parent=5 // pred_fallthru
        _
    $region6: #{up_projection_unit.1} parent=1 // loop_footer
      %s19 = sadd.s32 1, %s15
    $region7: #{up_projection_unit.1} parent=1 // loop_footer_branch
      %14 = sbr.rel target = $region3
    $region8: #{up_projection_unit.1} parent=1 // loop_exit
      _
    %693 = vsyncpa [#allocation3], 1
    %s694 = scalar_lea.sflag [#allocation3], 1
    %695 = vsyncpa %s694, 1

</llo_original>
